<compile_context>
chip_gen: v7x
topology: tpu7x:2x2x1
jax: 0.10.0
libtpu: 0.0.40
codegen_flags: <defaults>
</compile_context>

<pallas_src>
import functools
import math

import jax
import jax.numpy as jnp
from jax import lax
from jax.experimental import pallas as pl
from jax.experimental.pallas import tpu as pltpu


def _round_up(x, m):
    return ((x + m - 1) // m) * m


# ----------------------------------------------------------------------------
# Device-generation heuristics (best effort; conservative fallbacks)
# ----------------------------------------------------------------------------
def _tpu_flavor():
    kind = ""
    try:
        d = jax.devices()[0]
        if d.platform == "tpu":
            kind = d.device_kind.lower()
    except Exception:
        pass
    # Chips whose "parallel" grid axes shard across >1 TensorCore.
    multi_tc = any(tag in kind for tag in ("v7", "v5p", "v4", "v3"))
    # v7x has only 64 MiB physical VMEM per TensorCore.
    small_vmem = "v7" in kind
    return multi_tc, small_vmem


@functools.lru_cache(maxsize=1)
def _buffered_weights_supported():
    """Probe once whether pipeline_mode=pl.Buffered(1) (single-buffered,
    grid-invariant inputs) is supported by this JAX/Mosaic build; if not we
    silently fall back to the default double-buffered weight specs."""
    try:
        def k(x_ref, w_ref, o_ref):
            o_ref[...] = x_ref[...] + w_ref[0]

        f = pl.pallas_call(
            k,
            out_shape=jax.ShapeDtypeStruct((16, 128), jnp.float32),
            grid=(2,),
            in_specs=[
                pl.BlockSpec((8, 128), lambda i: (i, 0)),
                pl.BlockSpec((1, 8, 128), lambda i: (0, 0, 0),
                             pipeline_mode=pl.Buffered(1)),
            ],
            out_specs=pl.BlockSpec((8, 128), lambda i: (i, 0)),
        )
        x = jnp.ones((16, 128), jnp.float32)
        w = jnp.full((1, 8, 128), 2.0, jnp.float32)
        out = jax.block_until_ready(f(x, w))
        return bool(jnp.allclose(out, 3.0))
    except Exception:
        return False


# ----------------------------------------------------------------------------
# Pallas kernel: full MLP forward (hidden stack + fused, padded mean/chol head)
# ----------------------------------------------------------------------------
def _gaussian_nn_kernel(x_ref, w0_ref, b0_ref, wh_ref, bh_ref,
                        whead_ref, bhead_ref, out_ref,
                        *, num_hidden, compute_dtype):
    # MXU matmuls accumulate in f32; bias-add / ReLU stay f32 (v5e's VPU has
    # no bf16); operands are optionally bf16 (2x MXU rate on v6e/v7x).
    h = jnp.dot(x_ref[...].astype(compute_dtype), w0_ref[...],
                preferred_element_type=jnp.float32) + b0_ref[...]
    h = jnp.maximum(h, 0.0)

    # Remaining hidden layers (static unroll; num_hidden is small).
    for l in range(num_hidden):
        h = jnp.dot(h.astype(compute_dtype), wh_ref[l],
                    preferred_element_type=jnp.float32) + bh_ref[l]
        h = jnp.maximum(h, 0.0)

    # Fused output head [mean | flat_chol], zero-padded to a lane-dense width:
    # one MXU pass, one unmasked (full-lane) store stream.
    out_ref[...] = (jnp.dot(h.astype(compute_dtype), whead_ref[...],
                            preferred_element_type=jnp.float32)
                    + bhead_ref[...]).astype(out_ref.dtype)


# ----------------------------------------------------------------------------
# JAX glue: fill_triangular + diag_bijector (same semantics as the repo code)
# ----------------------------------------------------------------------------
def fill_triangular(x):
    """TFP-style fill_triangular (lower) for trailing dim m = n(n+1)/2."""
    m = x.shape[-1]
    n = int(round((math.sqrt(8.0 * m + 1.0) - 1.0) / 2.0))
    assert n * (n + 1) // 2 == m
    x_tail = x[..., n:]
    xc = jnp.concatenate([x_tail, jnp.flip(x, axis=-1)], axis=-1)
    xm = xc.reshape(x.shape[:-1] + (n, n))
    return jnp.tril(xm)


def inverse_softplus(x):
    # Stable inverse of softplus: log(exp(x)-1) = x + log1p(-exp(-x)).
    return x + jnp.log1p(-jnp.exp(-x))


def diag_bijector(fn, mat):
    # mat is already lower-triangular (output of fill_triangular), so the
    # strict-upper term of the original torch formula is identically zero.
    n = mat.shape[-1]
    diag = jnp.diagonal(mat, axis1=-2, axis2=-1)
    new_diag = fn(diag)
    eye = jnp.eye(n, dtype=mat.dtype)
    return jnp.tril(mat, -1) + new_diag[..., :, None] * eye


# ----------------------------------------------------------------------------
# One-time parameter preparation (hoisted out of the per-call wrapper)
# ----------------------------------------------------------------------------
def prepare_gaussian_nn_params(params, *, matmul_dtype=jnp.float32):
    """Fuse fc_mean/fc_chol into one head, zero-pad hidden & head widths to
    multiples of 128 lanes, and cast matmul operands to `matmul_dtype` once.
    Returns a dict consumed by gaussian_nn_forward(). Call this once and reuse
    it across forward calls (the casts/pads are pure HBM overhead per call)."""
    w0, b0, wh, bh = params["w0"], params["b0"], params["wh"], params["bh"]
    wm, bm, wc, bc = params["wm"], params["bm"], params["wc"], params["bc"]

    in_size, H = int(w0.shape[0]), int(w0.shape[1])
    dim = int(wm.shape[1])
    chol_dim = int(wc.shape[1])
    head_dim = dim + chol_dim
    num_hidden = int(wh.shape[0])

    H_pad = _round_up(H, 128)          # lane-dense hidden width
    head_pad = _round_up(head_dim, 128)  # lane-dense output width (unmasked vst)
    # in_size stays unpadded: it is the full-array minor dim (legal layout) and
    # K-padding with zeros buys nothing on the MXU.

    def padc(a, cols):                 # zero-pad the last dim up to `cols`
        return jnp.pad(a, [(0, 0)] * (a.ndim - 1) + [(0, cols - a.shape[-1])])

    w0_p = padc(w0, H_pad).astype(matmul_dtype)                 # (in, H_pad)
    b0_p = padc(b0, H_pad).astype(jnp.float32)                  # (1, H_pad)

    if num_hidden > 0:
        wh_p = jnp.pad(wh, ((0, 0), (0, H_pad - H), (0, H_pad - H)))
        bh_p = padc(bh, H_pad)
    else:
        # Dummy zero layer; the kernel's static loop never reads it.
        wh_p = jnp.zeros((1, H_pad, H_pad), jnp.float32)
        bh_p = jnp.zeros((1, 1, H_pad), jnp.float32)
    wh_p = wh_p.astype(matmul_dtype)
    bh_p = bh_p.astype(jnp.float32)

    w_heads = jnp.concatenate([wm, wc], axis=1)                 # (H, head_dim)
    b_heads = jnp.concatenate([bm, bc], axis=1)                 # (1, head_dim)
    w_heads_p = jnp.pad(w_heads, ((0, H_pad - H), (0, head_pad - head_dim))
                        ).astype(matmul_dtype)
    b_heads_p = padc(b_heads, head_pad).astype(jnp.float32)

    return dict(
        w0=w0_p, b0=b0_p, wh=wh_p, bh=bh_p,
        w_heads=w_heads_p, b_heads=b_heads_p,
        meta=dict(in_size=in_size, H=H, H_pad=H_pad, dim=dim,
                  chol_dim=chol_dim, head_dim=head_dim, head_pad=head_pad,
                  num_hidden=num_hidden, matmul_dtype=jnp.dtype(matmul_dtype)),
    )


# ----------------------------------------------------------------------------
# Tiling / resource helpers
# ----------------------------------------------------------------------------
def _choose_batch_tile(B, *, multi_tc, cap):
    """Sublane-aligned batch tile; 128/256 alignment once the batch is large;
    >=2 grid steps only on multi-TensorCore chips (single-TC grids are just a
    sequential loop, so grid==1 is best there when it fits)."""
    align = 256 if B >= 1024 else (128 if B >= 512 else 8)
    target = pl.cdiv(B, 2) if (multi_tc and B > 8) else B
    tile = _round_up(target, align)
    return int(max(8, min(tile, cap)))


def _vmem_estimate_bytes(tile, *, in_size, H_pad, head_pad, num_hidden,
                         x_itemsize, w_itemsize, weight_buffers):
    io = 2 * tile * in_size * x_itemsize + 2 * tile * head_pad * 4
    w = (in_size * H_pad + max(num_hidden, 1) * H_pad * H_pad
         + H_pad * head_pad) * w_itemsize
    b = ((1 + max(num_hidden, 1)) * H_pad + head_pad) * 4
    act = 2 * tile * H_pad * 4            # live f32 activations in the body
    return io + weight_buffers * (w + b) + act


# ----------------------------------------------------------------------------
# Forward wrapper
# ----------------------------------------------------------------------------
def gaussian_nn_forward(x, prepared, *, batch_tile=None,
                        init_std=1.0, minimal_std=0.001):
    if "meta" not in prepared:            # convenience: accept raw params
        prepared = prepare_gaussian_nn_params(prepared)
    meta = prepared["meta"]
    in_size, H_pad = meta["in_size"], meta["H_pad"]
    dim, head_dim, head_pad = meta["dim"], meta["head_dim"], meta["head_pad"]
    num_hidden = meta["num_hidden"]
    matmul_dtype = meta["matmul_dtype"]

    B = x.shape[0]
    assert x.shape[1] == in_size

    multi_tc, small_vmem = _tpu_flavor()
    single_buffer_weights = _buffered_weights_supported()
    weight_buffers = 1 if single_buffer_weights else 2
    w_itemsize = jnp.dtype(matmul_dtype).itemsize

    cap = 1024 if small_vmem else 2048            # v7x: 64 MiB physical VMEM
    budget = (40 << 20) if small_vmem else (96 << 20)
    if batch_tile is None:
        batch_tile = _choose_batch_tile(B, multi_tc=multi_tc, cap=cap)

    def _est(t):
        return _vmem_estimate_bytes(
            t, in_size=in_size, H_pad=H_pad, head_pad=head_pad,
            num_hidden=num_hidden, x_itemsize=x.dtype.itemsize,
            w_itemsize=w_itemsize, weight_buffers=weight_buffers)

    est = _est(batch_tile)
    while est > budget and batch_tile > 8:        # shrink tile, not the limit
        batch_tile = max(8, _round_up(batch_tile // 2, 8))
        est = _est(batch_tile)

    # Pad the batch to a whole number of tiles (even tile count on 2-TC chips).
    n_tiles = pl.cdiv(B, batch_tile)
    if multi_tc and n_tiles % 2:
        n_tiles += 1
    B_pad = n_tiles * batch_tile
    if B_pad != B:
        x = jnp.pad(x, ((0, B_pad - B), (0, 0)))

    pipeline_mode = pl.Buffered(1) if single_buffer_weights else None

    def wspec(shape):                    # grid-invariant (resident) weights
        nd = len(shape)
        idx = lambda i, _nd=nd: (0,) * _nd
        if pipeline_mode is None:
            return pl.BlockSpec(shape, idx)
        return pl.BlockSpec(shape, idx, pipeline_mode=pipeline_mode)

    flops = 2 * B_pad * (in_size * H_pad + num_hidden * H_pad * H_pad
                         + H_pad * head_pad)
    bytes_accessed = (x.size * x.dtype.itemsize
                      + prepared["w0"].size * w_itemsize
                      + prepared["wh"].size * w_itemsize
                      + prepared["w_heads"].size * w_itemsize
                      + 4 * (prepared["b0"].size + prepared["bh"].size
                             + prepared["b_heads"].size)
                      + 4 * B_pad * head_pad)
    cost = pl.CostEstimate(flops=int(flops), transcendentals=0,
                           bytes_accessed=int(bytes_accessed))

    compiler_kwargs = dict(dimension_semantics=("parallel",))
    if est > (12 << 20):
        phys_cap = (48 << 20) if small_vmem else (100 << 20)
        compiler_kwargs["vmem_limit_bytes"] = int(min(est * 1.5, phys_cap))

    fused = pl.pallas_call(
        functools.partial(_gaussian_nn_kernel,
                          num_hidden=num_hidden,
                          compute_dtype=matmul_dtype),
        out_shape=jax.ShapeDtypeStruct((B_pad, head_pad), jnp.float32),
        grid=(B_pad // batch_tile,),
        in_specs=[
            pl.BlockSpec((batch_tile, in_size), lambda i: (i, 0)),
            wspec(prepared["w0"].shape), wspec(prepared["b0"].shape),
            wspec(prepared["wh"].shape), wspec(prepared["bh"].shape),
            wspec(prepared["w_heads"].shape), wspec(prepared["b_heads"].shape),
        ],
        out_specs=pl.BlockSpec((batch_tile, head_pad), lambda i: (i, 0)),
        compiler_params=pltpu.CompilerParams(**compiler_kwargs),
        cost_estimate=cost,
    )(x, prepared["w0"], prepared["b0"], prepared["wh"], prepared["bh"],
      prepared["w_heads"], prepared["b_heads"])

    mean = fused[:B, :dim]
    flat_chol = fused[:B, dim:head_dim]

    # chol post-processing (cheap, O(B * dim^2)) stays in plain JAX.
    shift = inverse_softplus(jnp.float32(init_std - minimal_std))
    chol = diag_bijector(
        lambda z: jax.nn.softplus(z + shift) + minimal_std,
        fill_triangular(flat_chol))
    return mean, chol


# ----------------------------------------------------------------------------
# Deterministic parameter init (PyTorch nn.Linear-style uniform bounds)
# ----------------------------------------------------------------------------
def init_params(key, in_size, num_layers, hidden, dim):
    assert num_layers >= 1
    chol_dim = dim * (dim + 1) // 2
    keys = jax.random.split(key, 2 * (num_layers + 2))
    ki = iter(keys)

    def linear(fan_in, fan_out):
        bound = 1.0 / math.sqrt(fan_in)
        w = jax.random.uniform(next(ki), (fan_in, fan_out),
                               minval=-bound, maxval=bound, dtype=jnp.float32)
        b = jax.random.uniform(next(ki), (1, fan_out),
                               minval=-bound, maxval=bound, dtype=jnp.float32)
        return w, b

    w0, b0 = linear(in_size, hidden)
    whs, bhs = [], []
    for _ in range(1, num_layers):
        w, b = linear(hidden, hidden)
        whs.append(w)
        bhs.append(b)
    if whs:
        wh = jnp.stack(whs, axis=0)                  # (L-1, H, H)
        bh = jnp.stack(bhs, axis=0)                  # (L-1, 1, H)
    else:
        wh = jnp.zeros((0, hidden, hidden), jnp.float32)
        bh = jnp.zeros((0, 1, hidden), jnp.float32)
    wm, bm = linear(hidden, dim)
    wc, bc = linear(hidden, chol_dim)
    return dict(w0=w0, b0=b0, wh=wh, bh=bh, wm=wm, bm=bm, wc=wc, bc=bc)


# ----------------------------------------------------------------------------
# Plain-JAX reference (full-precision dots so it matches the f32 kernel path)
# ----------------------------------------------------------------------------
def reference_forward(x, params, *, init_std=1.0, minimal_std=0.001):
    dot = functools.partial(jnp.dot, precision=lax.Precision.HIGHEST)
    h = jnp.maximum(dot(x, params["w0"]) + params["b0"], 0.0)
    for l in range(params["wh"].shape[0]):
        h = jnp.maximum(dot(h, params["wh"][l]) + params["bh"][l], 0.0)
    mean = dot(h, params["wm"]) + params["bm"]
    flat_chol = dot(h, params["wc"]) + params["bc"]
    shift = inverse_softplus(jnp.float32(init_std - minimal_std))
    chol = diag_bijector(
        lambda z: jax.nn.softplus(z + shift) + minimal_std,
        fill_triangular(flat_chol))
    return mean, chol


if __name__ == "__main__":
    # Shapes consistent with GaussianNN(in_size, num_layers,
    # num_neuron_component_layer, dim)
    in_size, num_layers, hidden, dim = 4, 2, 32, 4
    batch = 16

    key = jax.random.PRNGKey(0)
    k_x, k_p = jax.random.split(key)
    x = jax.random.normal(k_x, (batch, in_size), dtype=jnp.float32)
    params = init_params(k_p, in_size, num_layers, hidden, dim)
    mean_ref, chol_ref = reference_forward(x, params)

    # --- f32 matmul operands: near-bit parity with the plain-JAX reference ---
    prep_f32 = prepare_gaussian_nn_params(params, matmul_dtype=jnp.float32)
    mean, chol = jax.block_until_ready(gaussian_nn_forward(x, prep_f32))
    assert mean.shape == (batch, dim)
    assert chol.shape == (batch, dim, dim)
    assert jnp.allclose(mean, mean_ref, atol=1e-4, rtol=1e-4)
    assert jnp.allclose(chol, chol_ref, atol=1e-4, rtol=1e-4)

    # --- non-multiple-of-8 batch exercises the pad-to-tile / slice path ---
    mean_o, chol_o = jax.block_until_ready(gaussian_nn_forward(x[:13], prep_f32))
    assert jnp.allclose(mean_o, mean_ref[:13], atol=1e-4, rtol=1e-4)
    assert jnp.allclose(chol_o, chol_ref[:13], atol=1e-4, rtol=1e-4)

    # --- bf16 matmul operands (v6e/v7x fast path), looser tolerance ---
    prep_bf16 = prepare_gaussian_nn_params(params, matmul_dtype=jnp.bfloat16)
    mean_b, chol_b = jax.block_until_ready(gaussian_nn_forward(x, prep_bf16))
    assert jnp.allclose(mean_b, mean_ref, atol=5e-2, rtol=5e-2)
    assert jnp.allclose(chol_b, chol_ref, atol=5e-2, rtol=5e-2)

    print("KERNEL_OK")
</pallas_src>

<mosaic_0001>
module attributes {stable_mosaic.version = 11 : i64} {
  func.func @k(%arg0: i32, %arg1: memref<8x128xf32, #tpu.memory_space<vmem>>, %arg2: memref<1x8x128xf32, #tpu.memory_space<vmem>>, %arg3: memref<8x128xf32, #tpu.memory_space<vmem>>) attributes {dimension_semantics = [#tpu.dimension_semantics<arbitrary>], iteration_bounds = array<i64: 2>, scalar_prefetch = 0 : i64, scratch_operands = 0 : i64, tpu.core_type = #tpu.core_type<tc>, window_params = [{transform_indices = @transform_0, window_bounds = array<i64: 8, 128>}, {pipeline_mode = #tpu.pipeline_mode<synchronous>, transform_indices = @transform_1, window_bounds = array<i64: 1, 8, 128>}, {transform_indices = @transform_2, window_bounds = array<i64: 8, 128>}]} {
    %c0 = arith.constant 0 : index
    %c0_0 = arith.constant 0 : index
    %0 = vector.load %arg1[%c0, %c0_0] : memref<8x128xf32, #tpu.memory_space<vmem>>, vector<8x128xf32>
    %c0_1 = arith.constant 0 : index
    %c0_2 = arith.constant 0 : index
    %c0_3 = arith.constant 0 : index
    %1 = vector.load %arg2[%c0_1, %c0_2, %c0_3] : memref<1x8x128xf32, #tpu.memory_space<vmem>>, vector<1x8x128xf32>
    %2 = vector.shape_cast %1 : vector<1x8x128xf32> to vector<8x128xf32>
    %3 = arith.addf %0, %2 : vector<8x128xf32>
    %c0_4 = arith.constant 0 : index
    %c0_5 = arith.constant 0 : index
    %4 = vector.load %arg3[%c0_4, %c0_5] : memref<8x128xf32, #tpu.memory_space<vmem>>, vector<8x128xf32>
    tpu.vector_store %arg3[%c0_4, %c0_5], %3 {strides = array<i32>} : memref<8x128xf32, #tpu.memory_space<vmem>>, vector<8x128xf32>,
    return
  }
  func.func @transform_0(%arg0: i32) -> (i32, i32) {
    %c0_i32 = arith.constant 0 : i32
    %c0_i32_0 = arith.constant 0 : i32
    return %arg0, %c0_i32 : i32, i32
  }
  func.func @transform_1(%arg0: i32) -> (i32, i32, i32) {
    %c0_i32 = arith.constant 0 : i32
    %c0_i32_0 = arith.constant 0 : i32
    %c0_i32_1 = arith.constant 0 : i32
    %c0_i32_2 = arith.constant 0 : i32
    return %c0_i32, %c0_i32_0, %c0_i32_1 : i32, i32, i32
  }
  func.func @transform_2(%arg0: i32) -> (i32, i32) {
    %c0_i32 = arith.constant 0 : i32
    %c0_i32_0 = arith.constant 0 : i32
    return %arg0, %c0_i32 : i32, i32
  }
}

module attributes {stable_mosaic.version = 11 : i64} {
  func.func @_gaussian_nn_kernel(%arg0: i32, %arg1: memref<16x4xf32, #tpu.memory_space<vmem>>, %arg2: memref<4x128xf32, #tpu.memory_space<vmem>>, %arg3: memref<1x128xf32, #tpu.memory_space<vmem>>, %arg4: memref<1x128x128xf32, #tpu.memory_space<vmem>>, %arg5: memref<1x1x128xf32, #tpu.memory_space<vmem>>, %arg6: memref<128x128xf32, #tpu.memory_space<vmem>>, %arg7: memref<1x128xf32, #tpu.memory_space<vmem>>, %arg8: memref<16x128xf32, #tpu.memory_space<vmem>>) attributes {dimension_semantics = [#tpu.dimension_semantics<parallel>], iteration_bounds = array<i64: 1>, scalar_prefetch = 0 : i64, scratch_operands = 0 : i64, tpu.core_type = #tpu.core_type<tc>, window_params = [{transform_indices = @transform_0, window_bounds = array<i64: 16, 4>}, {pipeline_mode = #tpu.pipeline_mode<synchronous>, transform_indices = @transform_1, window_bounds = array<i64: 4, 128>}, {pipeline_mode = #tpu.pipeline_mode<synchronous>, transform_indices = @transform_2, window_bounds = array<i64: 1, 128>}, {pipeline_mode = #tpu.pipeline_mode<synchronous>, transform_indices = @transform_3, window_bounds = array<i64: 1, 128, 128>}, {pipeline_mode = #tpu.pipeline_mode<synchronous>, transform_indices = @transform_4, window_bounds = array<i64: 1, 1, 128>}, {pipeline_mode = #tpu.pipeline_mode<synchronous>, transform_indices = @transform_5, window_bounds = array<i64: 128, 128>}, {pipeline_mode = #tpu.pipeline_mode<synchronous>, transform_indices = @transform_6, window_bounds = array<i64: 1, 128>}, {transform_indices = @transform_7, window_bounds = array<i64: 16, 128>}]} {
    %c0 = arith.constant 0 : index
    %c0_0 = arith.constant 0 : index
    %0 = vector.load %arg1[%c0, %c0_0] : memref<16x4xf32, #tpu.memory_space<vmem>>, vector<16x4xf32>
    %c0_1 = arith.constant 0 : index
    %c0_2 = arith.constant 0 : index
    %1 = vector.load %arg2[%c0_1, %c0_2] : memref<4x128xf32, #tpu.memory_space<vmem>>, vector<4x128xf32>
    %cst = arith.constant dense<0.000000e+00> : vector<16x128xf32>
    %2 = tpu.matmul %0, %1, %cst {dimension_numbers = #tpu.dot_dimension_numbers<[1], [0], [0], [1], [0, 0, 1, 1], [], []>} : vector<16x4xf32>, vector<4x128xf32>, vector<16x128xf32> -> vector<16x128xf32>
    %c0_3 = arith.constant 0 : index
    %c0_4 = arith.constant 0 : index
    %3 = vector.load %arg3[%c0_3, %c0_4] : memref<1x128xf32, #tpu.memory_space<vmem>>, vector<1x128xf32>
    %4 = vector.broadcast %3 : vector<1x128xf32> to vector<16x128xf32>
    %5 = arith.addf %2, %4 : vector<16x128xf32>
    %cst_5 = arith.constant 0.000000e+00 : f32
    %6 = vector.broadcast %cst_5 : f32 to vector<16x128xf32>
    %7 = arith.maximumf %5, %6 : vector<16x128xf32>
    %c0_6 = arith.constant 0 : index
    %c0_7 = arith.constant 0 : index
    %c0_8 = arith.constant 0 : index
    %8 = vector.load %arg4[%c0_6, %c0_7, %c0_8] : memref<1x128x128xf32, #tpu.memory_space<vmem>>, vector<1x128x128xf32>
    %9 = vector.shape_cast %8 : vector<1x128x128xf32> to vector<128x128xf32>
    %cst_9 = arith.constant dense<0.000000e+00> : vector<16x128xf32>
    %10 = tpu.matmul %7, %9, %cst_9 {dimension_numbers = #tpu.dot_dimension_numbers<[1], [0], [0], [1], [0, 0, 1, 1], [], []>} : vector<16x128xf32>, vector<128x128xf32>, vector<16x128xf32> -> vector<16x128xf32>
    %c0_10 = arith.constant 0 : index
    %c0_11 = arith.constant 0 : index
    %c0_12 = arith.constant 0 : index
    %11 = vector.load %arg5[%c0_10, %c0_11, %c0_12] : memref<1x1x128xf32, #tpu.memory_space<vmem>>, vector<1x1x128xf32>
    %12 = vector.shape_cast %11 : vector<1x1x128xf32> to vector<1x128xf32>
    %13 = vector.broadcast %12 : vector<1x128xf32> to vector<16x128xf32>
    %14 = arith.addf %10, %13 : vector<16x128xf32>
    %cst_13 = arith.constant 0.000000e+00 : f32
    %15 = vector.broadcast %cst_13 : f32 to vector<16x128xf32>
    %16 = arith.maximumf %14, %15 : vector<16x128xf32>
    %c0_14 = arith.constant 0 : index
    %c0_15 = arith.constant 0 : index
    %17 = vector.load %arg6[%c0_14, %c0_15] : memref<128x128xf32, #tpu.memory_space<vmem>>, vector<128x128xf32>
    %cst_16 = arith.constant dense<0.000000e+00> : vector<16x128xf32>
    %18 = tpu.matmul %16, %17, %cst_16 {dimension_numbers = #tpu.dot_dimension_numbers<[1], [0], [0], [1], [0, 0, 1, 1], [], []>} : vector<16x128xf32>, vector<128x128xf32>, vector<16x128xf32> -> vector<16x128xf32>
    %c0_17 = arith.constant 0 : index
    %c0_18 = arith.constant 0 : index
    %19 = vector.load %arg7[%c0_17, %c0_18] : memref<1x128xf32, #tpu.memory_space<vmem>>, vector<1x128xf32>
    %20 = vector.broadcast %19 : vector<1x128xf32> to vector<16x128xf32>
    %21 = arith.addf %18, %20 : vector<16x128xf32>
    %c0_19 = arith.constant 0 : index
    %c0_20 = arith.constant 0 : index
    %22 = vector.load %arg8[%c0_19, %c0_20] : memref<16x128xf32, #tpu.memory_space<vmem>>, vector<16x128xf32>
    tpu.vector_store %arg8[%c0_19, %c0_20], %21 {strides = array<i32>} : memref<16x128xf32, #tpu.memory_space<vmem>>, vector<16x128xf32>,
    return
  }
  func.func @transform_0(%arg0: i32) -> (i32, i32) {
    %c0_i32 = arith.constant 0 : i32
    %c0_i32_0 = arith.constant 0 : i32
    return %arg0, %c0_i32 : i32, i32
  }
  func.func @transform_1(%arg0: i32) -> (i32, i32) {
    %c0_i32 = arith.constant 0 : i32
    %c0_i32_0 = arith.constant 0 : i32
    %c0_i32_1 = arith.constant 0 : i32
    return %c0_i32, %c0_i32_0 : i32, i32
  }
  func.func @transform_2(%arg0: i32) -> (i32, i32) {
    %c0_i32 = arith.constant 0 : i32
    %c0_i32_0 = arith.constant 0 : i32
    %c0_i32_1 = arith.constant 0 : i32
    return %c0_i32, %c0_i32_0 : i32, i32
  }
  func.func @transform_3(%arg0: i32) -> (i32, i32, i32) {
    %c0_i32 = arith.constant 0 : i32
    %c0_i32_0 = arith.constant 0 : i32
    %c0_i32_1 = arith.constant 0 : i32
    %c0_i32_2 = arith.constant 0 : i32
    return %c0_i32, %c0_i32_0, %c0_i32_1 : i32, i32, i32
  }
  func.func @transform_4(%arg0: i32) -> (i32, i32, i32) {
    %c0_i32 = arith.constant 0 : i32
    %c0_i32_0 = arith.constant 0 : i32
    %c0_i32_1 = arith.constant 0 : i32
    %c0_i32_2 = arith.constant 0 : i32
    return %c0_i32, %c0_i32_0, %c0_i32_1 : i32, i32, i32
  }
  func.func @transform_5(%arg0: i32) -> (i32, i32) {
    %c0_i32 = arith.constant 0 : i32
    %c0_i32_0 = arith.constant 0 : i32
    %c0_i32_1 = arith.constant 0 : i32
    return %c0_i32, %c0_i32_0 : i32, i32
  }
  func.func @transform_6(%arg0: i32) -> (i32, i32) {
    %c0_i32 = arith.constant 0 : i32
    %c0_i32_0 = arith.constant 0 : i32
    %c0_i32_1 = arith.constant 0 : i32
    return %c0_i32, %c0_i32_0 : i32, i32
  }
  func.func @transform_7(%arg0: i32) -> (i32, i32) {
    %c0_i32 = arith.constant 0 : i32
    %c0_i32_0 = arith.constant 0 : i32
    return %arg0, %c0_i32 : i32, i32
  }
}

</mosaic_0001>

<llo_original>
// kernel: tpu_custom_call.1
$region0: #{tpu_custom_call.1}
  #allocation0 [shape = 'u32[]', space=smem, size = 0x4, offset = 0x4, fixed_abs, tag = 'smem constant byte address 0x4 - core index']
  #allocation1 [shape = 'u32[144,128]{1,0:T(1,128)}', space=vmem, size = 0x12000, scoped, tag = 'internal scratch']
  %s0 = inlined_call_operand.hbm [shape: f32[16,128], index: 0, kind: input, shape index: {}]
  %s1 = inlined_call_operand.hbm [shape: f32[1,8,128], index: 1, kind: input, shape index: {}]
  %s2 = inlined_call_operand.hbm [shape: f32[16,128], index: 2, kind: output, shape index: {}]
  %s3 = sld [smem:[#allocation0]]
  $region49: #{tpu_custom_call.1} parent=0
    _
  %s5 = ssub.s32 1, %s3
  %s6 = scalar_select 0, %s5, %s3
  $region1: #{tpu_custom_call.1} parent=0
    #allocation2 [shape = 'u8[8192]{0}', space=vmem, size = 0x2000, scoped, tag = 'input window, operand 0']
    #allocation3 [shape = 's32[2]{0}', space=sflag, size = 0x8, scoped, tag = 'scoped memory for tpu_custom_call.1']
    #allocation4 [shape = 's32[2]{0}', space=sflag, size = 0x8, scoped, tag = 'scoped memory for tpu_custom_call.1']
    #allocation5 [shape = 'u8[4096]{0}', space=vmem, size = 0x1000, scoped, tag = 'input window, operand 1, single buffered']
    #allocation6 [shape = 's32[1]{0}', space=sflag, size = 0x4, scoped, tag = 'scoped memory for tpu_custom_call.1']
    #allocation7 [shape = 'u8[8192]{0}', space=vmem, size = 0x2000, scoped, tag = 'output window, operand 0']
    %7 = vsyncpa [#allocation3], 0
    %s8 = scalar_lea.sflag [#allocation3], 1
    %9 = vsyncpa %s8, 0
    %10 = vsyncpa [#allocation6], 0
    %11 = vsyncpa [#allocation4], 0
    %s12 = scalar_lea.sflag [#allocation4], 1
    %13 = vsyncpa %s12, 0
    loop: start=0, step=1, limit=4
    $region2: #{tpu_custom_call.1} parent=1 // loop_pre_header
      _
    $region3: #{tpu_custom_call.1} parent=1 // loop_header
      %s15 = sphi 0, %s19
      %p16 = scmp.ge.s32.totalorder %s15, 4
      %s25 = sphi 0, %s27
      %s28 = sphi 0, %s25
      %s29 = sphi 0, %s28
      %s45 = sphi 0, %s29
      %s49 = sphi 0, %s49
      %s51 = sphi 0, %s49
      %s52 = sphi 0, %s51
      %s66 = sphi 0, %s52
      %s72 = sphi 0, %s74
      %s75 = sphi 0, %s72
      %s76 = sphi 0, %s75
      %s92 = sphi 0, %s76
    $region4: #{tpu_custom_call.1} parent=1 // loop_header_branch
      %18 = sbr.rel (%p16) target = $region8
    $region5: #{tpu_custom_call.1} parent=1 // loop_body
      %s20 = ssub.s32 %s15, 1
      %s21 = ssub.s32 %s15, 2
      %s22 = sadd.s32 %s15, 1
      %s23 = ssub.s32 %s15, %s22
      %p24 = scmp.eq.s32.totalorder %s23, 0
      %s26 = sadd.s32 %s25, 1
      %s27 = scalar_select %p24, %s25, %s26
      %p30 = pneg %p24
      %p31 = scmp.eq.s32.totalorder %s15, 1
      %p32 = por %p30, %p31
      %p33 = scmp.ne.s32.totalorder %s25, %s28
      %p34 = scmp.eq.s32.totalorder %s15, 0
      %p35 = por %p33, %p34
      %p36 = scmp.ne.s32.totalorder %s25, %s28
      %p37 = scmp.eq.s32.totalorder %s20, 1
      %p38 = por %p36, %p37
      %p39 = scmp.ne.s32.totalorder %s28, %s29
      %p40 = scmp.eq.s32.totalorder %s20, 0
      %p41 = por %p39, %p40
      %p42 = scmp.ne.s32.totalorder %s28, %s29
      %p43 = scmp.eq.s32.totalorder %s21, 1
      %p44 = por %p42, %p43
      %p46 = scmp.ne.s32.totalorder %s29, %s45
      %p47 = scmp.eq.s32.totalorder %s21, 0
      %p48 = por %p46, %p47
      %s50 = sadd.s32 %s49, 1
      %p53 = scmp.eq.s32.totalorder %s15, 1
      %p54 = scmp.ne.s32.totalorder %s49, %s51
      %p55 = scmp.eq.s32.totalorder %s15, 0
      %p56 = por %p54, %p55
      %p57 = scmp.ne.s32.totalorder %s49, %s51
      %p58 = scmp.eq.s32.totalorder %s20, 1
      %p59 = por %p57, %p58
      %p60 = scmp.ne.s32.totalorder %s51, %s52
      %p61 = scmp.eq.s32.totalorder %s20, 0
      %p62 = por %p60, %p61
      %p63 = scmp.ne.s32.totalorder %s51, %s52
      %p64 = scmp.eq.s32.totalorder %s21, 1
      %p65 = por %p63, %p64
      %p67 = scmp.ne.s32.totalorder %s52, %s66
      %p68 = scmp.eq.s32.totalorder %s21, 0
      %p69 = por %p67, %p68
      %s70 = ssub.s32 %s15, %s22
      %p71 = scmp.eq.s32.totalorder %s70, 0
      %s73 = sadd.s32 %s72, 1
      %s74 = scalar_select %p71, %s72, %s73
      %p77 = pneg %p71
      %p78 = scmp.eq.s32.totalorder %s15, 1
      %p79 = por %p77, %p78
      %p80 = scmp.ne.s32.totalorder %s72, %s75
      %p81 = scmp.eq.s32.totalorder %s15, 0
      %p82 = por %p80, %p81
      %p83 = scmp.ne.s32.totalorder %s72, %s75
      %p84 = scmp.eq.s32.totalorder %s20, 1
      %p85 = por %p83, %p84
      %p86 = scmp.ne.s32.totalorder %s75, %s76
      %p87 = scmp.eq.s32.totalorder %s20, 0
      %p88 = por %p86, %p87
      %p89 = scmp.ne.s32.totalorder %s75, %s76
      %p90 = scmp.eq.s32.totalorder %s21, 1
      %p91 = por %p89, %p90
      %p93 = scmp.ne.s32.totalorder %s76, %s92
      %p94 = scmp.eq.s32.totalorder %s21, 0
      %p95 = por %p93, %p94
      %p96 = scmp.le.s32.totalorder 1, %s15
      %p97 = scmp.lt.s32.totalorder %s15, 3
      %p98 = pnand %p96, %p97
      %p99 = pneg %p98
      // Predicated region
      $region9: #{tpu_custom_call.1} parent=5 // pred_check
        _
      $region10: #{tpu_custom_call.1} parent=5 // pred_check_branch
        %101 = sbr.rel (%p98) target = $region12
      $region11: #{tpu_custom_call.1} parent=5 // pred_region
        %s102 = ssub.s32 %s15, 1
        // Predicated region
        $region13: #{tpu_custom_call.1} parent=11 // pred_check
          %p103 = pneg %p62
        $region14: #{tpu_custom_call.1} parent=11 // pred_check_branch
          %105 = sbr.rel (%p103) target = $region16
        $region15: #{tpu_custom_call.1} parent=11 // pred_region
          %s107 = ssub.s32 128, 128
          %108 = vsyncadd [#allocation6], %s107
          %s110 = sshll.u32 [#allocation5], 4
          %s111 = int_to_ptr.vmem [resolvable:$true] %s110
          %113 = dma.hbm_to_vmem [thread:$0]  %s1, 128, %s111, [#allocation6]
        $region16: #{tpu_custom_call.1} parent=11 // pred_fallthru
          _
      $region12: #{tpu_custom_call.1} parent=5 // pred_fallthru
        _
      %p114 = scmp.lt.s32.totalorder %s15, 2
      // Predicated region
      $region17: #{tpu_custom_call.1} parent=5 // pred_check
        %p115 = pneg %p114
      $region18: #{tpu_custom_call.1} parent=5 // pred_check_branch
        %117 = sbr.rel (%p115) target = $region20
      $region19: #{tpu_custom_call.1} parent=5 // pred_region
        // Predicated region
        $region21: #{tpu_custom_call.1} parent=19 // pred_check
          %p118 = pneg %p35
        $region22: #{tpu_custom_call.1} parent=19 // pred_check_branch
          %120 = sbr.rel (%p118) target = $region24
        $region23: #{tpu_custom_call.1} parent=19 // pred_region
          %s121 = sand.u32 %s25, 1
          %s122 = scalar_lea.sflag [#allocation3], %s121
          %s123 = sand.u32 %s25, 1
          %s124 = smul.addr %s123, 8
          %s125 = scalar_lea.vmem [#allocation2], %s124
          %s127 = ssub.s32 128, 128
          %128 = vsyncadd %s122, %s127
          %s129 = smul.addr %s15, 128
          %s130 = scalar_lea.hbm %s0, %s129
          %s132 = sshll.u32 %s125, 4
          %s133 = int_to_ptr.vmem [resolvable:$true] %s132
          %135 = dma.hbm_to_vmem [thread:$0]  %s130, 128, %s133, %s122
        $region24: #{tpu_custom_call.1} parent=19 // pred_fallthru
          _
      $region20: #{tpu_custom_call.1} parent=5 // pred_fallthru
        _
      %p136 = scmp.le.s32.totalorder 1, %s15
      %p137 = scmp.lt.s32.totalorder %s15, 3
      %p138 = pnand %p136, %p137
      %p139 = pneg %p138
      // Predicated region
      $region25: #{tpu_custom_call.1} parent=5 // pred_check
        _
      $region26: #{tpu_custom_call.1} parent=5 // pred_check_branch
        %141 = sbr.rel (%p138) target = $region28
      $region27: #{tpu_custom_call.1} parent=5 // pred_region
        %s142 = ssub.s32 %s15, 1
        %s143 = sand.u32 %s28, 1
        %s144 = scalar_lea.sflag [#allocation3], %s143
        %s145 = sand.u32 %s28, 1
        %s146 = smul.addr %s145, 8
        %s147 = scalar_lea.vmem [#allocation2], %s146
        // Predicated region
        $region29: #{tpu_custom_call.1} parent=27 // pred_check
          %p148 = pneg %p41
        $region30: #{tpu_custom_call.1} parent=27 // pred_check_branch
          %150 = sbr.rel (%p148) target = $region32
        $region31: #{tpu_custom_call.1} parent=27 // pred_region
          %151 = dma.done %s144, 128
        $region32: #{tpu_custom_call.1} parent=27 // pred_fallthru
          _
        // Predicated region
        $region33: #{tpu_custom_call.1} parent=27 // pred_check
          %p152 = pneg %p62
        $region34: #{tpu_custom_call.1} parent=27 // pred_check_branch
          %154 = sbr.rel (%p152) target = $region36
        $region35: #{tpu_custom_call.1} parent=27 // pred_region
          %155 = dma.done [#allocation6], 128
        $region36: #{tpu_custom_call.1} parent=27 // pred_fallthru
          _
        %s156 = sand.u32 %s28, 1
        %s157 = scalar_lea.sflag [#allocation3], %s156
        %s158 = sand.u32 %s28, 1
        %s159 = smul.addr %s158, 8
        %s160 = scalar_lea.vmem [#allocation2], %s159
        %p161 = pneg %p41
        %p162 = pneg %p38
        %p163 = pneg %p62
        %p164 = pneg %p59
        %p165 = pneg %p88
        %p166 = pneg %p85
        %s167 = sand.u32 %s75, 1
        %s168 = scalar_lea.sflag [#allocation4], %s167
        %s169 = sand.u32 %s75, 1
        %s170 = smul.addr %s169, 8
        %s171 = scalar_lea.vmem [#allocation7], %s170
        %v172 = vld [vmem:[%s147] sm:$0xff]
        %v173 = vld [vmem:[#allocation5] sm:$0xff]
        %v174 = vadd.f32 %v172, %v173
        %175 = vst [vmem:[%s171] sm:$0xff] %v174
        %s176 = sand.u32 %s75, 1
        %s177 = scalar_lea.sflag [#allocation4], %s176
        %s178 = sand.u32 %s75, 1
        %s179 = smul.addr %s178, 8
        %s180 = scalar_lea.vmem [#allocation7], %s179
        // Predicated region
        $region37: #{tpu_custom_call.1} parent=27 // pred_check
          %p181 = pneg %p85
        $region38: #{tpu_custom_call.1} parent=27 // pred_check_branch
          %183 = sbr.rel (%p181) target = $region40
        $region39: #{tpu_custom_call.1} parent=27 // pred_region
          %s185 = ssub.s32 128, 128
          %186 = vsyncadd %s177, %s185
          %s187 = smul.addr %s20, 128
          %s188 = scalar_lea.hbm %s2, %s187
          %s190 = sshll.u32 %s180, 4
          %s191 = int_to_ptr.vmem [resolvable:$true] %s190
          %193 = dma.vmem_to_hbm [thread:$0]  %s191, 128, %s188, %s177
        $region40: #{tpu_custom_call.1} parent=27 // pred_fallthru
          _
      $region28: #{tpu_custom_call.1} parent=5 // pred_fallthru
        _
      %p194 = scmp.le.s32.totalorder 2, %s15
      // Predicated region
      $region41: #{tpu_custom_call.1} parent=5 // pred_check
        %p195 = pneg %p194
      $region42: #{tpu_custom_call.1} parent=5 // pred_check_branch
        %197 = sbr.rel (%p195) target = $region44
      $region43: #{tpu_custom_call.1} parent=5 // pred_region
        %s198 = ssub.s32 %s15, 2
        // Predicated region
        $region45: #{tpu_custom_call.1} parent=43 // pred_check
          %p199 = pneg %p91
        $region46: #{tpu_custom_call.1} parent=43 // pred_check_branch
          %201 = sbr.rel (%p199) target = $region48
        $region47: #{tpu_custom_call.1} parent=43 // pred_region
          %s202 = sand.u32 %s76, 1
          %s203 = scalar_lea.sflag [#allocation4], %s202
          %s204 = sand.u32 %s76, 1
          %s205 = smul.addr %s204, 8
          %s206 = scalar_lea.vmem [#allocation7], %s205
          %207 = dma.done %s203, 128
        $region48: #{tpu_custom_call.1} parent=43 // pred_fallthru
          _
      $region44: #{tpu_custom_call.1} parent=5 // pred_fallthru
        _
    $region6: #{tpu_custom_call.1} parent=1 // loop_footer
      %s19 = sadd.s32 1, %s15
    $region7: #{tpu_custom_call.1} parent=1 // loop_footer_branch
      %14 = sbr.rel target = $region3
    $region8: #{tpu_custom_call.1} parent=1 // loop_exit
      _
    %208 = vsyncpa [#allocation3], 1
    %s209 = scalar_lea.sflag [#allocation3], 1
    %210 = vsyncpa %s209, 1
    %211 = vsyncpa [#allocation6], 1
    %212 = vsyncpa [#allocation4], 1
    %s213 = scalar_lea.sflag [#allocation4], 1
    %214 = vsyncpa %s213, 1

// kernel: tpu_custom_call.1
$region0: #{tpu_custom_call.1}
  #allocation0 [shape = 'u32[]', space=smem, size = 0x4, offset = 0x4, fixed_abs, tag = 'smem constant byte address 0x4 - core index']
  #allocation1 [shape = 'u32[144,128]{1,0:T(1,128)}', space=vmem, size = 0x12000, scoped, tag = 'internal scratch']
  %s0 = inlined_call_operand.vmem [shape: f32[16,4], index: 0, kind: input, shape index: {}]
  %s1 = inlined_call_operand.vmem [shape: f32[4,128], index: 1, kind: input, shape index: {}]
  %s2 = inlined_call_operand.vmem [shape: f32[1,128], index: 2, kind: input, shape index: {}]
  %s3 = inlined_call_operand.hbm [shape: f32[1,128,128], index: 3, kind: input, shape index: {}]
  %s4 = inlined_call_operand.vmem [shape: f32[1,1,128], index: 4, kind: input, shape index: {}]
  %s5 = inlined_call_operand.hbm [shape: f32[128,128], index: 5, kind: input, shape index: {}]
  %s6 = inlined_call_operand.vmem [shape: f32[1,128], index: 6, kind: input, shape index: {}]
  %s7 = inlined_call_operand.hbm [shape: f32[16,128], index: 7, kind: output, shape index: {}]
  %s8 = sld [smem:[#allocation0]]
  $region46: #{tpu_custom_call.1} parent=0
    _
  %s10 = ssub.s32 1, %s8
  %s11 = scalar_select 0, %s10, %s8
  $region1: #{tpu_custom_call.1} parent=0
    #allocation2 [shape = 'u8[65536]{0}', space=vmem, size = 0x10000, scoped, tag = 'input window, operand 3, single buffered']
    #allocation3 [shape = 's32[1]{0}', space=sflag, size = 0x4, scoped, tag = 'scoped memory for tpu_custom_call.1']
    #allocation4 [shape = 's32[1]{0}', space=sflag, size = 0x4, scoped, tag = 'scoped memory for tpu_custom_call.1']
    #allocation5 [shape = 'u8[65536]{0}', space=vmem, size = 0x10000, scoped, tag = 'input window, operand 5, single buffered']
    #allocation6 [shape = 's32[1]{0}', space=sflag, size = 0x4, scoped, tag = 'scoped memory for tpu_custom_call.1']
    #allocation7 [shape = 'u8[8192]{0}', space=vmem, size = 0x2000, scoped, tag = 'output window, operand 0, single buffered']
    %12 = vsyncpa [#allocation3], 0
    %13 = vsyncpa [#allocation6], 0
    %14 = vsyncpa [#allocation4], 0
    // Predicated region
    $region2: #{tpu_custom_call.1} parent=1 // pred_check
      _
    $region3: #{tpu_custom_call.1} parent=1 // pred_check_branch
      %16 = sbr.rel (0) target = $region5
    $region4: #{tpu_custom_call.1} parent=1 // pred_region
      _
    $region5: #{tpu_custom_call.1} parent=1 // pred_fallthru
      _
    // Predicated region
    $region6: #{tpu_custom_call.1} parent=1 // pred_check
      _
    $region7: #{tpu_custom_call.1} parent=1 // pred_check_branch
      %18 = sbr.rel (0) target = $region9
    $region8: #{tpu_custom_call.1} parent=1 // pred_region
      _
    $region9: #{tpu_custom_call.1} parent=1 // pred_fallthru
      _
    // Predicated region
    $region10: #{tpu_custom_call.1} parent=1 // pred_check
      _
    $region11: #{tpu_custom_call.1} parent=1 // pred_check_branch
      %20 = sbr.rel (0) target = $region13
    $region12: #{tpu_custom_call.1} parent=1 // pred_region
      _
    $region13: #{tpu_custom_call.1} parent=1 // pred_fallthru
      _
    // Predicated region
    $region14: #{tpu_custom_call.1} parent=1 // pred_check
      _
    $region15: #{tpu_custom_call.1} parent=1 // pred_check_branch
      %22 = sbr.rel (0) target = $region17
    $region16: #{tpu_custom_call.1} parent=1 // pred_region
      %s24 = ssub.s32 2048, 2048
      %25 = vsyncadd [#allocation3], %s24
      %s26 = sshll.u32 [#allocation2], 4
      %s27 = int_to_ptr.vmem [resolvable:$true] %s26
      %32 = dma.hbm_to_vmem [thread:$0]  %s3, 2048, %s27, [#allocation3], 128, 128, 8
    $region17: #{tpu_custom_call.1} parent=1 // pred_fallthru
      _
    // Predicated region
    $region18: #{tpu_custom_call.1} parent=1 // pred_check
      _
    $region19: #{tpu_custom_call.1} parent=1 // pred_check_branch
      %34 = sbr.rel (0) target = $region21
    $region20: #{tpu_custom_call.1} parent=1 // pred_region
      _
    $region21: #{tpu_custom_call.1} parent=1 // pred_fallthru
      _
    // Predicated region
    $region22: #{tpu_custom_call.1} parent=1 // pred_check
      _
    $region23: #{tpu_custom_call.1} parent=1 // pred_check_branch
      %36 = sbr.rel (0) target = $region25
    $region24: #{tpu_custom_call.1} parent=1 // pred_region
      %s38 = ssub.s32 2048, 2048
      %39 = vsyncadd [#allocation6], %s38
      %s40 = sshll.u32 [#allocation5], 4
      %s41 = int_to_ptr.vmem [resolvable:$true] %s40
      %46 = dma.hbm_to_vmem [thread:$0]  %s5, 2048, %s41, [#allocation6], 128, 128, 8
    $region25: #{tpu_custom_call.1} parent=1 // pred_fallthru
      _
    // Predicated region
    $region26: #{tpu_custom_call.1} parent=1 // pred_check
      _
    $region27: #{tpu_custom_call.1} parent=1 // pred_check_branch
      %48 = sbr.rel (0) target = $region29
    $region28: #{tpu_custom_call.1} parent=1 // pred_region
      _
    $region29: #{tpu_custom_call.1} parent=1 // pred_fallthru
      _
    // Predicated region
    $region30: #{tpu_custom_call.1} parent=1 // pred_check
      _
    $region31: #{tpu_custom_call.1} parent=1 // pred_check_branch
      %50 = sbr.rel (0) target = $region33
    $region32: #{tpu_custom_call.1} parent=1 // pred_region
      %51 = dma.done [#allocation3], 2048
    $region33: #{tpu_custom_call.1} parent=1 // pred_fallthru
      _
    // Predicated region
    $region34: #{tpu_custom_call.1} parent=1 // pred_check
      _
    $region35: #{tpu_custom_call.1} parent=1 // pred_check_branch
      %53 = sbr.rel (0) target = $region37
    $region36: #{tpu_custom_call.1} parent=1 // pred_region
      %54 = dma.done [#allocation6], 2048
    $region37: #{tpu_custom_call.1} parent=1 // pred_fallthru
      _
    %v55 = vld [vmem:[%s0] sm:$0xff]
    %v56 = vld [vmem:[%s0 + $0x8] sm:$0xff]
    %v57 = vld [vmem:[%s1] sm:$0xf]
    %v58 = vld [vmem:[%s2] sm:$0x1]
    %v60 = vlaneseq
    %v61 = vshrl.u32 %v60, 7
    %v62 = vsub.s32 0, %v61
    %v63 = vrot.slane %v58, %v62
    %vm65 = vcmask 31744
    %v67 = vsel %vm65, %v55, 0
    %v70 = vsel %vm65, %v56, 0
    %vm72 = vcmask 1043456
    %v74 = vsel %vm72, %v57, 0
    %76 = vmatprep.subr.mxu0 0.0
    %77 = vmatpush1.msra.mxu0 %v74
    %78 = vmatprep.subr.mxu0 0.0
    %79 = vmatpush1.msra.mxu0 0.0
    %80 = vmatprep.subr.mxu0 0.0
    %81 = vmatpush1.msra.mxu0 0.0
    %82 = vmatprep.subr.mxu0 0.0
    %83 = vmatpush1.msra.mxu0 0.0
    %84 = vmatprep.subr.mxu0 0.0
    %85 = vmatpush1.msra.mxu0 0.0
    %86 = vmatprep.subr.mxu0 0.0
    %87 = vmatpush1.msra.mxu0 0.0
    %88 = vmatprep.subr.mxu0 0.0
    %89 = vmatpush1.msra.mxu0 0.0
    %90 = vmatprep.subr.mxu0 0.0
    %91 = vmatpush1.msra.mxu0 0.0
    %92 = vmatprep.subr.mxu0 0.0
    %93 = vmatpush1.msra.mxu0 0.0
    %94 = vmatprep.subr.mxu0 0.0
    %95 = vmatpush1.msra.mxu0 0.0
    %96 = vmatprep.subr.mxu0 0.0
    %97 = vmatpush1.msra.mxu0 0.0
    %98 = vmatprep.subr.mxu0 0.0
    %99 = vmatpush1.msra.mxu0 0.0
    %100 = vmatprep.subr.mxu0 0.0
    %101 = vmatpush1.msra.mxu0 0.0
    %102 = vmatprep.subr.mxu0 0.0
    %103 = vmatpush1.msra.mxu0 0.0
    %104 = vmatprep.subr.mxu0 0.0
    %105 = vmatpush1.msra.mxu0 0.0
    %106 = vmatprep.subr.mxu0 0.0
    %107 = vmatpush1.msra.mxu0 0.0
    %108 = vmatprep.subr.mxu0 0.0
    %109 = vmatpush1.msra.mxu0 0.0
    %110 = vmatprep.subr.mxu0 0.0
    %111 = vmatpush1.msra.mxu0 0.0
    %112 = vmatprep.subr.mxu0 0.0
    %113 = vmatpush1.msra.mxu0 0.0
    %114 = vmatprep.subr.mxu0 0.0
    %115 = vmatpush1.msra.mxu0 0.0
    %116 = vmatprep.subr.mxu0 0.0
    %117 = vmatpush1.msra.mxu0 0.0
    %118 = vmatprep.subr.mxu0 0.0
    %119 = vmatpush1.msra.mxu0 0.0
    %120 = vmatprep.subr.mxu0 0.0
    %121 = vmatpush1.msra.mxu0 0.0
    %122 = vmatprep.subr.mxu0 0.0
    %123 = vmatpush1.msra.mxu0 0.0
    %124 = vmatprep.subr.mxu0 0.0
    %125 = vmatpush1.msra.mxu0 0.0
    %126 = vmatprep.subr.mxu0 0.0
    %127 = vmatpush1.msra.mxu0 0.0
    %128 = vmatprep.subr.mxu0 0.0
    %129 = vmatpush1.msra.mxu0 0.0
    %130 = vmatprep.subr.mxu0 0.0
    %131 = vmatpush1.msra.mxu0 0.0
    %132 = vmatprep.subr.mxu0 0.0
    %133 = vmatpush1.msra.mxu0 0.0
    %134 = vmatprep.subr.mxu0 0.0
    %135 = vmatpush1.msra.mxu0 0.0
    %136 = vmatprep.subr.mxu0 0.0
    %137 = vmatpush1.msra.mxu0 0.0
    %138 = vmatprep.subr.mxu0 0.0
    %139 = vmatpush1.msra.mxu0 0.0
    %140 = vmatprep.mubr.f32.mxu0 0.0
    %141 = vmatmul.mubr.f32.gmra.mrb[0].mxu0 %v67
    %v142 = vpop.f32.mrb[0].mxu0
    %v143 = vadd.f32 %v63, %v142
    %v144 = vpop.f32.mrb[0].mxu0
    %145 = vmatprep.mubr.f32.mxu0 0.0
    %146 = vmatmul.mubr.f32.gmra.mrb[0].mxu0 %v70
    %v147 = vpop.f32.mrb[0].mxu0
    %v148 = vadd.f32 %v63, %v147
    %v149 = vpop.f32.mrb[0].mxu0
    %150 = vdwg.mxu0
    %v151 = vmax.f32 %v143, 0.0
    %v152 = vmax.f32 %v148, 0.0
    %v153 = vld [vmem:[#allocation2] sm:$0xff]
    %v154 = vld [vmem:[#allocation2 + $0x8] sm:$0xff]
    %v155 = vld [vmem:[#allocation2 + $0x10] sm:$0xff]
    %v156 = vld [vmem:[#allocation2 + $0x18] sm:$0xff]
    %v157 = vld [vmem:[#allocation2 + $0x20] sm:$0xff]
    %v158 = vld [vmem:[#allocation2 + $0x28] sm:$0xff]
    %v159 = vld [vmem:[#allocation2 + $0x30] sm:$0xff]
    %v160 = vld [vmem:[#allocation2 + $0x38] sm:$0xff]
    %v161 = vld [vmem:[#allocation2 + $0x40] sm:$0xff]
    %v162 = vld [vmem:[#allocation2 + $0x48] sm:$0xff]
    %v163 = vld [vmem:[#allocation2 + $0x50] sm:$0xff]
    %v164 = vld [vmem:[#allocation2 + $0x58] sm:$0xff]
    %v165 = vld [vmem:[#allocation2 + $0x60] sm:$0xff]
    %v166 = vld [vmem:[#allocation2 + $0x68] sm:$0xff]
    %v167 = vld [vmem:[#allocation2 + $0x70] sm:$0xff]
    %v168 = vld [vmem:[#allocation2 + $0x78] sm:$0xff]
    %v169 = vld [vmem:[%s4] sm:$0x1]
    %v171 = vlaneseq
    %v172 = vshrl.u32 %v171, 7
    %v173 = vsub.s32 0, %v172
    %v174 = vrot.slane %v169, %v173
    %176 = vmatprep.subr.mxu0 0.0
    %177 = vmatpush1.msra.mxu0 %v153
    %178 = vmatprep.subr.mxu0 0.0
    %179 = vmatpush1.msra.mxu0 %v154
    %180 = vmatprep.subr.mxu0 0.0
    %181 = vmatpush1.msra.mxu0 %v155
    %182 = vmatprep.subr.mxu0 0.0
    %183 = vmatpush1.msra.mxu0 %v156
    %184 = vmatprep.subr.mxu0 0.0
    %185 = vmatpush1.msra.mxu0 %v157
    %186 = vmatprep.subr.mxu0 0.0
    %187 = vmatpush1.msra.mxu0 %v158
    %188 = vmatprep.subr.mxu0 0.0
    %189 = vmatpush1.msra.mxu0 %v159
    %190 = vmatprep.subr.mxu0 0.0
    %191 = vmatpush1.msra.mxu0 %v160
    %192 = vmatprep.subr.mxu0 0.0
    %193 = vmatpush1.msra.mxu0 %v161
    %194 = vmatprep.subr.mxu0 0.0
    %195 = vmatpush1.msra.mxu0 %v162
    %196 = vmatprep.subr.mxu0 0.0
    %197 = vmatpush1.msra.mxu0 %v163
    %198 = vmatprep.subr.mxu0 0.0
    %199 = vmatpush1.msra.mxu0 %v164
    %200 = vmatprep.subr.mxu0 0.0
    %201 = vmatpush1.msra.mxu0 %v165
    %202 = vmatprep.subr.mxu0 0.0
    %203 = vmatpush1.msra.mxu0 %v166
    %204 = vmatprep.subr.mxu0 0.0
    %205 = vmatpush1.msra.mxu0 %v167
    %206 = vmatprep.subr.mxu0 0.0
    %207 = vmatpush1.msra.mxu0 %v168
    %208 = vmatprep.subr.mxu0 0.0
    %209 = vmatpush1.msra.mxu0 0.0
    %210 = vmatprep.subr.mxu0 0.0
    %211 = vmatpush1.msra.mxu0 0.0
    %212 = vmatprep.subr.mxu0 0.0
    %213 = vmatpush1.msra.mxu0 0.0
    %214 = vmatprep.subr.mxu0 0.0
    %215 = vmatpush1.msra.mxu0 0.0
    %216 = vmatprep.subr.mxu0 0.0
    %217 = vmatpush1.msra.mxu0 0.0
    %218 = vmatprep.subr.mxu0 0.0
    %219 = vmatpush1.msra.mxu0 0.0
    %220 = vmatprep.subr.mxu0 0.0
    %221 = vmatpush1.msra.mxu0 0.0
    %222 = vmatprep.subr.mxu0 0.0
    %223 = vmatpush1.msra.mxu0 0.0
    %224 = vmatprep.subr.mxu0 0.0
    %225 = vmatpush1.msra.mxu0 0.0
    %226 = vmatprep.subr.mxu0 0.0
    %227 = vmatpush1.msra.mxu0 0.0
    %228 = vmatprep.subr.mxu0 0.0
    %229 = vmatpush1.msra.mxu0 0.0
    %230 = vmatprep.subr.mxu0 0.0
    %231 = vmatpush1.msra.mxu0 0.0
    %232 = vmatprep.subr.mxu0 0.0
    %233 = vmatpush1.msra.mxu0 0.0
    %234 = vmatprep.subr.mxu0 0.0
    %235 = vmatpush1.msra.mxu0 0.0
    %236 = vmatprep.subr.mxu0 0.0
    %237 = vmatpush1.msra.mxu0 0.0
    %238 = vmatprep.subr.mxu0 0.0
    %239 = vmatpush1.msra.mxu0 0.0
    %240 = vmatprep.mubr.f32.mxu0 0.0
    %241 = vmatmul.mubr.f32.gmra.mrb[0].mxu0 %v151
    %v242 = vpop.f32.mrb[0].mxu0
    %v243 = vadd.f32 %v174, %v242
    %v244 = vpop.f32.mrb[0].mxu0
    %245 = vmatprep.mubr.f32.mxu0 0.0
    %246 = vmatmul.mubr.f32.gmra.mrb[0].mxu0 %v152
    %v247 = vpop.f32.mrb[0].mxu0
    %v248 = vadd.f32 %v174, %v247
    %v249 = vpop.f32.mrb[0].mxu0
    %250 = vdwg.mxu0
    %v251 = vmax.f32 %v243, 0.0
    %v252 = vmax.f32 %v248, 0.0
    %v253 = vld [vmem:[#allocation5] sm:$0xff]
    %v254 = vld [vmem:[#allocation5 + $0x8] sm:$0xff]
    %v255 = vld [vmem:[#allocation5 + $0x10] sm:$0xff]
    %v256 = vld [vmem:[#allocation5 + $0x18] sm:$0xff]
    %v257 = vld [vmem:[#allocation5 + $0x20] sm:$0xff]
    %v258 = vld [vmem:[#allocation5 + $0x28] sm:$0xff]
    %v259 = vld [vmem:[#allocation5 + $0x30] sm:$0xff]
    %v260 = vld [vmem:[#allocation5 + $0x38] sm:$0xff]
    %v261 = vld [vmem:[#allocation5 + $0x40] sm:$0xff]
    %v262 = vld [vmem:[#allocation5 + $0x48] sm:$0xff]
    %v263 = vld [vmem:[#allocation5 + $0x50] sm:$0xff]
    %v264 = vld [vmem:[#allocation5 + $0x58] sm:$0xff]
    %v265 = vld [vmem:[#allocation5 + $0x60] sm:$0xff]
    %v266 = vld [vmem:[#allocation5 + $0x68] sm:$0xff]
    %v267 = vld [vmem:[#allocation5 + $0x70] sm:$0xff]
    %v268 = vld [vmem:[#allocation5 + $0x78] sm:$0xff]
    %v269 = vld [vmem:[%s6] sm:$0x1]
    %v271 = vlaneseq
    %v272 = vshrl.u32 %v271, 7
    %v273 = vsub.s32 0, %v272
    %v274 = vrot.slane %v269, %v273
    %276 = vmatprep.subr.mxu0 0.0
    %277 = vmatpush1.msra.mxu0 %v253
    %278 = vmatprep.subr.mxu0 0.0
    %279 = vmatpush1.msra.mxu0 %v254
    %280 = vmatprep.subr.mxu0 0.0
    %281 = vmatpush1.msra.mxu0 %v255
    %282 = vmatprep.subr.mxu0 0.0
    %283 = vmatpush1.msra.mxu0 %v256
    %284 = vmatprep.subr.mxu0 0.0
    %285 = vmatpush1.msra.mxu0 %v257
    %286 = vmatprep.subr.mxu0 0.0
    %287 = vmatpush1.msra.mxu0 %v258
    %288 = vmatprep.subr.mxu0 0.0
    %289 = vmatpush1.msra.mxu0 %v259
    %290 = vmatprep.subr.mxu0 0.0
    %291 = vmatpush1.msra.mxu0 %v260
    %292 = vmatprep.subr.mxu0 0.0
    %293 = vmatpush1.msra.mxu0 %v261
    %294 = vmatprep.subr.mxu0 0.0
    %295 = vmatpush1.msra.mxu0 %v262
    %296 = vmatprep.subr.mxu0 0.0
    %297 = vmatpush1.msra.mxu0 %v263
    %298 = vmatprep.subr.mxu0 0.0
    %299 = vmatpush1.msra.mxu0 %v264
    %300 = vmatprep.subr.mxu0 0.0
    %301 = vmatpush1.msra.mxu0 %v265
    %302 = vmatprep.subr.mxu0 0.0
    %303 = vmatpush1.msra.mxu0 %v266
    %304 = vmatprep.subr.mxu0 0.0
    %305 = vmatpush1.msra.mxu0 %v267
    %306 = vmatprep.subr.mxu0 0.0
    %307 = vmatpush1.msra.mxu0 %v268
    %308 = vmatprep.subr.mxu0 0.0
    %309 = vmatpush1.msra.mxu0 0.0
    %310 = vmatprep.subr.mxu0 0.0
    %311 = vmatpush1.msra.mxu0 0.0
    %312 = vmatprep.subr.mxu0 0.0
    %313 = vmatpush1.msra.mxu0 0.0
    %314 = vmatprep.subr.mxu0 0.0
    %315 = vmatpush1.msra.mxu0 0.0
    %316 = vmatprep.subr.mxu0 0.0
    %317 = vmatpush1.msra.mxu0 0.0
    %318 = vmatprep.subr.mxu0 0.0
    %319 = vmatpush1.msra.mxu0 0.0
    %320 = vmatprep.subr.mxu0 0.0
    %321 = vmatpush1.msra.mxu0 0.0
    %322 = vmatprep.subr.mxu0 0.0
    %323 = vmatpush1.msra.mxu0 0.0
    %324 = vmatprep.subr.mxu0 0.0
    %325 = vmatpush1.msra.mxu0 0.0
    %326 = vmatprep.subr.mxu0 0.0
    %327 = vmatpush1.msra.mxu0 0.0
    %328 = vmatprep.subr.mxu0 0.0
    %329 = vmatpush1.msra.mxu0 0.0
    %330 = vmatprep.subr.mxu0 0.0
    %331 = vmatpush1.msra.mxu0 0.0
    %332 = vmatprep.subr.mxu0 0.0
    %333 = vmatpush1.msra.mxu0 0.0
    %334 = vmatprep.subr.mxu0 0.0
    %335 = vmatpush1.msra.mxu0 0.0
    %336 = vmatprep.subr.mxu0 0.0
    %337 = vmatpush1.msra.mxu0 0.0
    %338 = vmatprep.subr.mxu0 0.0
    %339 = vmatpush1.msra.mxu0 0.0
    %340 = vmatprep.mubr.f32.mxu0 0.0
    %341 = vmatmul.mubr.f32.gmra.mrb[0].mxu0 %v251
    %v342 = vpop.f32.mrb[0].mxu0
    %v343 = vadd.f32 %v274, %v342
    %v344 = vpop.f32.mrb[0].mxu0
    %345 = vmatprep.mubr.f32.mxu0 0.0
    %346 = vmatmul.mubr.f32.gmra.mrb[0].mxu0 %v252
    %v347 = vpop.f32.mrb[0].mxu0
    %v348 = vadd.f32 %v274, %v347
    %v349 = vpop.f32.mrb[0].mxu0
    %350 = vdwg.mxu0
    %351 = vst [vmem:[#allocation7] sm:$0xff] %v343
    %352 = vst [vmem:[#allocation7 + $0x8] sm:$0xff] %v348
    // Predicated region
    $region38: #{tpu_custom_call.1} parent=1 // pred_check
      _
    $region39: #{tpu_custom_call.1} parent=1 // pred_check_branch
      %354 = sbr.rel (0) target = $region41
    $region40: #{tpu_custom_call.1} parent=1 // pred_region
      %s356 = ssub.s32 256, 256
      %357 = vsyncadd [#allocation4], %s356
      %s358 = sshll.u32 [#allocation7], 4
      %s359 = int_to_ptr.vmem [resolvable:$true] %s358
      %364 = dma.vmem_to_hbm [thread:$0]  %s359, 256, %s7, [#allocation4], 128, 128, 8
    $region41: #{tpu_custom_call.1} parent=1 // pred_fallthru
      _
    // Predicated region
    $region42: #{tpu_custom_call.1} parent=1 // pred_check
      _
    $region43: #{tpu_custom_call.1} parent=1 // pred_check_branch
      %366 = sbr.rel (0) target = $region45
    $region44: #{tpu_custom_call.1} parent=1 // pred_region
      %367 = dma.done [#allocation4], 256
    $region45: #{tpu_custom_call.1} parent=1 // pred_fallthru
      _
    %368 = vsyncpa [#allocation3], 1
    %369 = vsyncpa [#allocation6], 1
    %370 = vsyncpa [#allocation4], 1

</llo_original>
